<compile_context>
chip_gen: v5e
topology: v5e:2x2
jax: 0.10.0
libtpu: 0.0.40
codegen_flags: <defaults>
</compile_context>

<pallas_src>
import functools

import jax
import jax.numpy as jnp
from jax.experimental import pallas as pl
from jax.experimental.pallas import tpu as pltpu

PACK = 4  # batch rows packed per MXU row via block-diagonal weights


def _round_up(n, m):
    return ((n + m - 1) // m) * m


def _cdiv(a, b):
    return -(-a // b)


def _block_diag(w, p):
    """(K, N) -> (p*K, p*N) with w repeated on the diagonal blocks."""
    return jnp.kron(jnp.eye(p, dtype=w.dtype), w)


def _mlp_kernel(x_ref, w1_ref, b1_ref, w2_ref, b2_ref, w3_ref, b3_ref, o_ref):
    """Packed 3-layer MLP on one batch tile.

    x_ref:  (TB, PACK*D) float32 (cast to the weight dtype in-kernel)
    w*_ref: block-diagonal weights (PACK*D,256) / (256,128) / (128,PACK*3)
    b*_ref: lane-tiled f32 biases
    o_ref:  (TB, PACK*3) float32
    """
    cdt = w1_ref.dtype  # bf16 (default) or f32

    # Hoisted bias loads.
    b1 = b1_ref[...]
    b2 = b2_ref[...]
    b3 = b3_ref[...]

    # In-kernel cast: x arrives as f32 (no extra HBM pass in the wrapper);
    # the VPU cast is hidden under the MXU-bound matmuls.
    x = x_ref[...].astype(cdt)

    # Layer 1: (TB, PACK*D) @ (PACK*D, PACK*64) -> f32 acc, bias + ReLU in f32.
    h1 = jnp.dot(x, w1_ref[...], preferred_element_type=jnp.float32)
    h1 = jnp.maximum(h1 + b1, 0.0)

    # Dropout(0.3): identity at inference (PyTorch eval()).
    # TODO(synk): training-mode dropout via pltpu.prng_seed / prng_random_bits.

    # Layer 2: (TB, 256) @ (256, 128)
    h2 = jnp.dot(h1.astype(cdt), w2_ref[...], preferred_element_type=jnp.float32)
    h2 = jnp.maximum(h2 + b2, 0.0)

    # Layer 3: (TB, 128) @ (128, PACK*3)
    h3 = jnp.dot(h2.astype(cdt), w3_ref[...], preferred_element_type=jnp.float32)
    o_ref[...] = (h3 + b3).astype(o_ref.dtype)


@functools.partial(jax.jit, static_argnames=("tile_b", "use_bf16"))
def enhanced_nn_forward(x, params, *, tile_b=1024, use_bf16=True):
    """Fused forward pass of EnhancedNN.

    x: (B, input_size) float32
    params: dict with w1 (D,64), b1 (1,64), w2 (64,32), b2 (1,32), w3 (32,3), b3 (1,3)
            (PyTorch (out,in) weights pre-transposed to (in,out)).
    tile_b: batch tile in *packed* rows (1 packed row = PACK original rows).
            1024 packed rows ~= 5 MiB scoped VMEM -> safe on v5e/v6e/v7x.
    returns: (B, 3) float32 logits
    """
    B, D = x.shape
    compute_dtype = jnp.bfloat16 if use_bf16 else jnp.float32

    # Block-diagonal packed weights (tiny; built once per call, VMEM-resident).
    w1 = _block_diag(params["w1"], PACK).astype(compute_dtype)   # (4D, 256)
    w2 = _block_diag(params["w2"], PACK).astype(compute_dtype)   # (256, 128)
    w3 = _block_diag(params["w3"], PACK).astype(compute_dtype)   # (128, 12)
    # Biases stay f32: added to the f32 MXU accumulator.
    b1 = jnp.tile(params["b1"].astype(jnp.float32), (1, PACK))   # (1, 256)
    b2 = jnp.tile(params["b2"].astype(jnp.float32), (1, PACK))   # (1, 128)
    b3 = jnp.tile(params["b3"].astype(jnp.float32), (1, PACK))   # (1, 12)

    # ---- Batch tiling over packed rows.
    pr = _cdiv(B, PACK)                                   # packed rows of real data
    tb = max(_round_up(min(tile_b, _round_up(pr, 8)), 8), 8)
    num_tiles = _cdiv(pr, tb)
    # Megacore: a moderate batch fitting one tile would idle the second v7x
    # TensorCore; split once there is enough work to amortize both tiles.
    if num_tiles == 1 and pr >= 256:
        num_tiles = 2
    # Rebalance the tile so batch padding stays < 8 packed rows per tile.
    tb = _round_up(_cdiv(pr, num_tiles), 8)
    pr_padded = num_tiles * tb
    b_padded = pr_padded * PACK

    if b_padded != B:
        # TODO(synk): this pad is one HBM copy of x; kept small (<8 packed
        # rows/tile) by the rebalanced tile above.
        x = jnp.pad(x, ((0, b_padded - B), (0, 0)))
    # Free reshape (rows contiguous): (B, D) -> (B/PACK, PACK*D).
    xp = x.reshape(pr_padded, PACK * D)

    # Weights/biases: constant block index -> DMA'd once, VMEM-resident.
    # TODO(synk): pipeline_mode=pl.Buffered(1) would reclaim their second
    # buffer (~0.2 MiB); omitted for lowering compatibility.
    resident = lambda a: pl.BlockSpec(a.shape, lambda i: (0, 0))

    bpe = 2 if use_bf16 else 4
    param_bytes = sum(int(a.size) * bpe for a in (w1, w2, w3)) + sum(
        int(a.size) * 4 for a in (b1, b2, b3)
    )
    cost = pl.CostEstimate(
        flops=2 * b_padded * (D * 64 + 64 * 32 + 32 * 3),
        transcendentals=0,
        bytes_accessed=pr_padded * (PACK * D) * 4
        + pr_padded * (PACK * 3) * 4
        + param_bytes,
    )

    out = pl.pallas_call(
        _mlp_kernel,
        out_shape=jax.ShapeDtypeStruct((pr_padded, PACK * 3), jnp.float32),
        grid=(num_tiles,),
        in_specs=[
            pl.BlockSpec((tb, PACK * D), lambda i: (i, 0)),   # x: streamed per tile
            resident(w1), resident(b1),
            resident(w2), resident(b2),
            resident(w3), resident(b3),
        ],
        out_specs=pl.BlockSpec((tb, PACK * 3), lambda i: (i, 0)),
        compiler_params=pltpu.CompilerParams(
            dimension_semantics=("parallel",),  # shard batch tiles across TCs (v7x)
        ),
        cost_estimate=cost,
    )(xp, w1, b1, w2, b2, w3, b3)

    # Free reshape back: (B/PACK, PACK*3) -> (B, 3).
    out = out.reshape(b_padded, 3)
    if b_padded != B:
        out = out[:B]
    return out


def init_params(key, input_size):
    """Parameter init mirroring the PyTorch module's shapes.

    PyTorch stores Linear weights as (out, in); we pre-transpose to (in, out)
    so the kernel computes x @ W directly.
    """
    k1, k2, k3, k4, k5, k6 = jax.random.split(key, 6)

    def linear_init(kw, kb, fan_in, fan_out):
        bound = 1.0 / jnp.sqrt(fan_in)
        w = jax.random.uniform(kw, (fan_in, fan_out), jnp.float32, -bound, bound)
        b = jax.random.uniform(kb, (1, fan_out), jnp.float32, -bound, bound)
        return w, b

    w1, b1 = linear_init(k1, k2, input_size, 64)
    w2, b2 = linear_init(k3, k4, 64, 32)
    w3, b3 = linear_init(k5, k6, 32, 3)
    return {"w1": w1, "b1": b1, "w2": w2, "b2": b2, "w3": w3, "b3": b3}


def _reference(x, params, use_bf16):
    """Pure-JAX reference with matching input quantization and f32 math."""
    cdt = jnp.bfloat16 if use_bf16 else jnp.float32
    q = lambda a: a.astype(cdt).astype(jnp.float32)
    h = jnp.maximum(q(x) @ q(params["w1"]) + params["b1"], 0.0)
    h = jnp.maximum(q(h) @ q(params["w2"]) + params["b2"], 0.0)
    return q(h) @ q(params["w3"]) + params["b3"]


if __name__ == "__main__":
    key = jax.random.PRNGKey(0)
    kx, kp = jax.random.split(key)

    input_size = 30   # breast-cancer feature count
    batch = 10        # deliberately not a multiple of PACK: exercises padding path

    x = jax.random.normal(kx, (batch, input_size), jnp.float32)
    params = init_params(kp, input_size)

    # bf16 weight path (default): f32 x DMA, in-kernel bf16 cast, f32 accumulation.
    out = jax.block_until_ready(enhanced_nn_forward(x, params, use_bf16=True))
    ref = _reference(x, params, True)
    assert out.shape == (batch, 3)
    assert jnp.allclose(out, ref, atol=2e-3, rtol=2e-3), float(jnp.max(jnp.abs(out - ref)))

    # Full-f32 path sanity check against the exact reference.
    out_f32 = jax.block_until_ready(enhanced_nn_forward(x, params, use_bf16=False))
    ref_f32 = _reference(x, params, False)
    assert out_f32.shape == (batch, 3)
    assert jnp.allclose(out_f32, ref_f32, atol=1e-5, rtol=1e-5), float(
        jnp.max(jnp.abs(out_f32 - ref_f32))
    )

    print("KERNEL_OK")
</pallas_src>

<mosaic_0001>
module attributes {stable_mosaic.version = 11 : i64} {
  func.func @_mlp_kernel(%arg0: i32, %arg1: memref<8x120xf32, #tpu.memory_space<vmem>>, %arg2: memref<120x256xbf16, #tpu.memory_space<vmem>>, %arg3: memref<1x256xf32, #tpu.memory_space<vmem>>, %arg4: memref<256x128xbf16, #tpu.memory_space<vmem>>, %arg5: memref<1x128xf32, #tpu.memory_space<vmem>>, %arg6: memref<128x12xbf16, #tpu.memory_space<vmem>>, %arg7: memref<1x12xf32, #tpu.memory_space<vmem>>, %arg8: memref<8x12xf32, #tpu.memory_space<vmem>>) attributes {dimension_semantics = [#tpu.dimension_semantics<parallel>], iteration_bounds = array<i64: 1>, scalar_prefetch = 0 : i64, scratch_operands = 0 : i64, tpu.core_type = #tpu.core_type<tc>, window_params = [{transform_indices = @transform_0, window_bounds = array<i64: 8, 120>}, {pipeline_mode = #tpu.pipeline_mode<synchronous>, transform_indices = @transform_1, window_bounds = array<i64: 120, 256>}, {pipeline_mode = #tpu.pipeline_mode<synchronous>, transform_indices = @transform_2, window_bounds = array<i64: 1, 256>}, {pipeline_mode = #tpu.pipeline_mode<synchronous>, transform_indices = @transform_3, window_bounds = array<i64: 256, 128>}, {pipeline_mode = #tpu.pipeline_mode<synchronous>, transform_indices = @transform_4, window_bounds = array<i64: 1, 128>}, {pipeline_mode = #tpu.pipeline_mode<synchronous>, transform_indices = @transform_5, window_bounds = array<i64: 128, 12>}, {pipeline_mode = #tpu.pipeline_mode<synchronous>, transform_indices = @transform_6, window_bounds = array<i64: 1, 12>}, {transform_indices = @transform_7, window_bounds = array<i64: 8, 12>}]} {
    %c0 = arith.constant 0 : index
    %c0_0 = arith.constant 0 : index
    %0 = vector.load %arg3[%c0, %c0_0] : memref<1x256xf32, #tpu.memory_space<vmem>>, vector<1x256xf32>
    %c0_1 = arith.constant 0 : index
    %c0_2 = arith.constant 0 : index
    %1 = vector.load %arg5[%c0_1, %c0_2] : memref<1x128xf32, #tpu.memory_space<vmem>>, vector<1x128xf32>
    %c0_3 = arith.constant 0 : index
    %c0_4 = arith.constant 0 : index
    %2 = vector.load %arg7[%c0_3, %c0_4] : memref<1x12xf32, #tpu.memory_space<vmem>>, vector<1x12xf32>
    %c0_5 = arith.constant 0 : index
    %c0_6 = arith.constant 0 : index
    %3 = vector.load %arg1[%c0_5, %c0_6] : memref<8x120xf32, #tpu.memory_space<vmem>>, vector<8x120xf32>
    %4 = arith.truncf %3 : vector<8x120xf32> to vector<8x120xbf16>
    %c0_7 = arith.constant 0 : index
    %c0_8 = arith.constant 0 : index
    %5 = vector.load %arg2[%c0_7, %c0_8] : memref<120x256xbf16, #tpu.memory_space<vmem>>, vector<120x256xbf16>
    %cst = arith.constant dense<0.000000e+00> : vector<8x256xf32>
    %6 = tpu.matmul %4, %5, %cst {dimension_numbers = #tpu.dot_dimension_numbers<[1], [0], [0], [1], [0, 0, 1, 1], [], []>} : vector<8x120xbf16>, vector<120x256xbf16>, vector<8x256xf32> -> vector<8x256xf32>
    %7 = vector.broadcast %0 : vector<1x256xf32> to vector<8x256xf32>
    %8 = arith.addf %6, %7 : vector<8x256xf32>
    %cst_9 = arith.constant 0.000000e+00 : f32
    %9 = vector.broadcast %cst_9 : f32 to vector<8x256xf32>
    %10 = arith.maximumf %8, %9 : vector<8x256xf32>
    %11 = arith.truncf %10 : vector<8x256xf32> to vector<8x256xbf16>
    %c0_10 = arith.constant 0 : index
    %c0_11 = arith.constant 0 : index
    %12 = vector.load %arg4[%c0_10, %c0_11] : memref<256x128xbf16, #tpu.memory_space<vmem>>, vector<256x128xbf16>
    %cst_12 = arith.constant dense<0.000000e+00> : vector<8x128xf32>
    %13 = tpu.matmul %11, %12, %cst_12 {dimension_numbers = #tpu.dot_dimension_numbers<[1], [0], [0], [1], [0, 0, 1, 1], [], []>} : vector<8x256xbf16>, vector<256x128xbf16>, vector<8x128xf32> -> vector<8x128xf32>
    %14 = vector.broadcast %1 : vector<1x128xf32> to vector<8x128xf32>
    %15 = arith.addf %13, %14 : vector<8x128xf32>
    %cst_13 = arith.constant 0.000000e+00 : f32
    %16 = vector.broadcast %cst_13 : f32 to vector<8x128xf32>
    %17 = arith.maximumf %15, %16 : vector<8x128xf32>
    %18 = arith.truncf %17 : vector<8x128xf32> to vector<8x128xbf16>
    %c0_14 = arith.constant 0 : index
    %c0_15 = arith.constant 0 : index
    %19 = vector.load %arg6[%c0_14, %c0_15] : memref<128x12xbf16, #tpu.memory_space<vmem>>, vector<128x12xbf16>
    %cst_16 = arith.constant dense<0.000000e+00> : vector<8x12xf32>
    %20 = tpu.matmul %18, %19, %cst_16 {dimension_numbers = #tpu.dot_dimension_numbers<[1], [0], [0], [1], [0, 0, 1, 1], [], []>} : vector<8x128xbf16>, vector<128x12xbf16>, vector<8x12xf32> -> vector<8x12xf32>
    %21 = vector.broadcast %2 : vector<1x12xf32> to vector<8x12xf32>
    %22 = arith.addf %20, %21 : vector<8x12xf32>
    %c0_17 = arith.constant 0 : index
    %c0_18 = arith.constant 0 : index
    %23 = vector.load %arg8[%c0_17, %c0_18] : memref<8x12xf32, #tpu.memory_space<vmem>>, vector<8x12xf32>
    tpu.vector_store %arg8[%c0_17, %c0_18], %22 {strides = array<i32>} : memref<8x12xf32, #tpu.memory_space<vmem>>, vector<8x12xf32>,
    return
  }
  func.func @transform_0(%arg0: i32) -> (i32, i32) {
    %c0_i32 = arith.constant 0 : i32
    %c0_i32_0 = arith.constant 0 : i32
    return %arg0, %c0_i32 : i32, i32
  }
  func.func @transform_1(%arg0: i32) -> (i32, i32) {
    %c0_i32 = arith.constant 0 : i32
    %c0_i32_0 = arith.constant 0 : i32
    %c0_i32_1 = arith.constant 0 : i32
    return %c0_i32, %c0_i32_0 : i32, i32
  }
  func.func @transform_2(%arg0: i32) -> (i32, i32) {
    %c0_i32 = arith.constant 0 : i32
    %c0_i32_0 = arith.constant 0 : i32
    %c0_i32_1 = arith.constant 0 : i32
    return %c0_i32, %c0_i32_0 : i32, i32
  }
  func.func @transform_3(%arg0: i32) -> (i32, i32) {
    %c0_i32 = arith.constant 0 : i32
    %c0_i32_0 = arith.constant 0 : i32
    %c0_i32_1 = arith.constant 0 : i32
    return %c0_i32, %c0_i32_0 : i32, i32
  }
  func.func @transform_4(%arg0: i32) -> (i32, i32) {
    %c0_i32 = arith.constant 0 : i32
    %c0_i32_0 = arith.constant 0 : i32
    %c0_i32_1 = arith.constant 0 : i32
    return %c0_i32, %c0_i32_0 : i32, i32
  }
  func.func @transform_5(%arg0: i32) -> (i32, i32) {
    %c0_i32 = arith.constant 0 : i32
    %c0_i32_0 = arith.constant 0 : i32
    %c0_i32_1 = arith.constant 0 : i32
    return %c0_i32, %c0_i32_0 : i32, i32
  }
  func.func @transform_6(%arg0: i32) -> (i32, i32) {
    %c0_i32 = arith.constant 0 : i32
    %c0_i32_0 = arith.constant 0 : i32
    %c0_i32_1 = arith.constant 0 : i32
    return %c0_i32, %c0_i32_0 : i32, i32
  }
  func.func @transform_7(%arg0: i32) -> (i32, i32) {
    %c0_i32 = arith.constant 0 : i32
    %c0_i32_0 = arith.constant 0 : i32
    return %arg0, %c0_i32 : i32, i32
  }
}

</mosaic_0001>

<llo_original>
// kernel: enhanced_nn_forward.1
$region0: #{enhanced_nn_forward.1}
  #allocation0 [shape = 'u32[]', space=smem, size = 0x4, offset = 0x4, fixed_abs, tag = 'smem constant byte address 0x4 - core index']
  #allocation1 [shape = 'u32[72,128]{1,0:T(1,128)}', space=vmem, size = 0x9000, scoped, tag = 'internal scratch']
  %s0 = inlined_call_operand.vmem [shape: f32[8,120], index: 0, kind: input, shape index: {}]
  %s1 = inlined_call_operand.vmem [shape: bf16[120,256], index: 1, kind: input, shape index: {}]
  %s2 = inlined_call_operand.vmem [shape: f32[1,256], index: 2, kind: input, shape index: {}]
  %s3 = inlined_call_operand.vmem [shape: bf16[256,128], index: 3, kind: input, shape index: {}]
  %s4 = inlined_call_operand.vmem [shape: f32[1,128], index: 4, kind: input, shape index: {}]
  %s5 = inlined_call_operand.vmem [shape: bf16[128,12], index: 5, kind: input, shape index: {}]
  %s6 = inlined_call_operand.vmem [shape: f32[1,12], index: 6, kind: input, shape index: {}]
  %s7 = inlined_call_operand.vmem [shape: f32[8,12], index: 7, kind: output, shape index: {}]
  %s8 = sld [smem:[#allocation0]]
  $region38: #{enhanced_nn_forward.1} parent=0
    _
  %s10 = ssub.s32 1, %s8
  %s11 = scalar_select 0, %s10, %s8
  // Predicated region
  $region2: #{enhanced_nn_forward.1} parent=0 // pred_check
    _
  $region3: #{enhanced_nn_forward.1} parent=0 // pred_check_branch
    %13 = sbr.rel (0) target = $region5
  $region4: #{enhanced_nn_forward.1} parent=0 // pred_region
    _
  $region5: #{enhanced_nn_forward.1} parent=0 // pred_fallthru
    _
  // Predicated region
  $region6: #{enhanced_nn_forward.1} parent=0 // pred_check
    _
  $region7: #{enhanced_nn_forward.1} parent=0 // pred_check_branch
    %15 = sbr.rel (0) target = $region9
  $region8: #{enhanced_nn_forward.1} parent=0 // pred_region
    _
  $region9: #{enhanced_nn_forward.1} parent=0 // pred_fallthru
    _
  // Predicated region
  $region10: #{enhanced_nn_forward.1} parent=0 // pred_check
    _
  $region11: #{enhanced_nn_forward.1} parent=0 // pred_check_branch
    %17 = sbr.rel (0) target = $region13
  $region12: #{enhanced_nn_forward.1} parent=0 // pred_region
    _
  $region13: #{enhanced_nn_forward.1} parent=0 // pred_fallthru
    _
  // Predicated region
  $region14: #{enhanced_nn_forward.1} parent=0 // pred_check
    _
  $region15: #{enhanced_nn_forward.1} parent=0 // pred_check_branch
    %19 = sbr.rel (0) target = $region17
  $region16: #{enhanced_nn_forward.1} parent=0 // pred_region
    _
  $region17: #{enhanced_nn_forward.1} parent=0 // pred_fallthru
    _
  // Predicated region
  $region18: #{enhanced_nn_forward.1} parent=0 // pred_check
    _
  $region19: #{enhanced_nn_forward.1} parent=0 // pred_check_branch
    %21 = sbr.rel (0) target = $region21
  $region20: #{enhanced_nn_forward.1} parent=0 // pred_region
    _
  $region21: #{enhanced_nn_forward.1} parent=0 // pred_fallthru
    _
  // Predicated region
  $region22: #{enhanced_nn_forward.1} parent=0 // pred_check
    _
  $region23: #{enhanced_nn_forward.1} parent=0 // pred_check_branch
    %23 = sbr.rel (0) target = $region25
  $region24: #{enhanced_nn_forward.1} parent=0 // pred_region
    _
  $region25: #{enhanced_nn_forward.1} parent=0 // pred_fallthru
    _
  // Predicated region
  $region26: #{enhanced_nn_forward.1} parent=0 // pred_check
    _
  $region27: #{enhanced_nn_forward.1} parent=0 // pred_check_branch
    %25 = sbr.rel (0) target = $region29
  $region28: #{enhanced_nn_forward.1} parent=0 // pred_region
    _
  $region29: #{enhanced_nn_forward.1} parent=0 // pred_fallthru
    _
  %v26 = vld [vmem:[%s2] sm:$0x3]
  %v27 = vld [vmem:[%s4] sm:$0x1]
  %v28 = vld [vmem:[%s6] sm:$0x1]
  %v29 = vld [vmem:[%s0] sm:$0xff]
  %v30 = vpack.c.bf16 %v29, %v29
  %v31 = vld [vmem:[%s1] sm:$0xff]
  %v32 = vld [vmem:[%s1 + $0x8] sm:$0xff]
  %v33 = vld [vmem:[%s1 + $0x10] sm:$0xff]
  %v34 = vld [vmem:[%s1 + $0x18] sm:$0xff]
  %v35 = vld [vmem:[%s1 + $0x20] sm:$0xff]
  %v36 = vld [vmem:[%s1 + $0x28] sm:$0xff]
  %v37 = vld [vmem:[%s1 + $0x30] sm:$0xff]
  %v38 = vld [vmem:[%s1 + $0x38] sm:$0xff]
  %v39 = vld [vmem:[%s1 + $0x40] sm:$0xff]
  %v40 = vld [vmem:[%s1 + $0x48] sm:$0xff]
  %v41 = vld [vmem:[%s1 + $0x50] sm:$0xff]
  %v42 = vld [vmem:[%s1 + $0x58] sm:$0xff]
  %v43 = vld [vmem:[%s1 + $0x60] sm:$0xff]
  %v44 = vld [vmem:[%s1 + $0x68] sm:$0xff]
  %v45 = vld [vmem:[%s1 + $0x70] sm:$0xff]
  %v47 = vperm.slane %v26, 0
  %v48 = vperm.slane %v26, 1
  %v66 = vunpack.c.l.b16 %v31
  %v67 = vunpack.c.h.b16 %v31
  %v68 = vunpack.c.l.b16 %v32
  %v69 = vunpack.c.h.b16 %v32
  %v70 = vunpack.c.l.b16 %v33
  %v71 = vunpack.c.h.b16 %v33
  %v72 = vunpack.c.l.b16 %v34
  %v73 = vunpack.c.h.b16 %v34
  %v74 = vunpack.c.l.b16 %v35
  %v75 = vunpack.c.h.b16 %v35
  %v76 = vunpack.c.l.b16 %v36
  %v77 = vunpack.c.h.b16 %v36
  %v78 = vunpack.c.l.b16 %v37
  %v79 = vunpack.c.h.b16 %v37
  %v80 = vunpack.c.l.b16 %v38
  %v81 = vunpack.c.h.b16 %v38
  %v82 = vunpack.c.l.b16 %v39
  %v83 = vunpack.c.h.b16 %v39
  %v84 = vunpack.c.l.b16 %v40
  %v85 = vunpack.c.h.b16 %v40
  %v86 = vunpack.c.l.b16 %v41
  %v87 = vunpack.c.h.b16 %v41
  %v88 = vunpack.c.l.b16 %v42
  %v89 = vunpack.c.h.b16 %v42
  %v90 = vunpack.c.l.b16 %v43
  %v91 = vunpack.c.h.b16 %v43
  %v92 = vunpack.c.l.b16 %v44
  %v93 = vunpack.c.h.b16 %v44
  %v94 = vunpack.c.l.b16 %v45
  %v95 = vunpack.c.h.b16 %v45
  %v96 = vpack.c.b16 %v68, %v66
  %v97 = vpack.c.b16 %v69, %v67
  %v98 = vpack.c.b16 %v72, %v70
  %v99 = vpack.c.b16 %v73, %v71
  %v100 = vpack.c.b16 %v76, %v74
  %v101 = vpack.c.b16 %v77, %v75
  %v102 = vpack.c.b16 %v80, %v78
  %v103 = vpack.c.b16 %v81, %v79
  %v104 = vpack.c.b16 %v84, %v82
  %v105 = vpack.c.b16 %v85, %v83
  %v106 = vpack.c.b16 %v88, %v86
  %v107 = vpack.c.b16 %v89, %v87
  %v108 = vpack.c.b16 %v92, %v90
  %v109 = vpack.c.b16 %v93, %v91
  %v110 = vpack.c.b16 %v94, %v94
  %v111 = vpack.c.b16 %v95, %v95
  %vm126 = vcmask 982016
  %v128 = vsel %vm126, %v30, 0
  %vm130 = vcmask 1043456
  %v132 = vsel %vm130, %v110, 0
  %v135 = vsel %vm130, %v111, 0
  %137 = vmatpush.bf16.msra.mxu0 %v132
  %138 = vmatpush.bf16.msra.mxu0 %v108
  %139 = vmatpush.bf16.msra.mxu0 %v106
  %140 = vmatpush.bf16.msra.mxu0 %v104
  %141 = vmatpush.bf16.msra.mxu0 %v102
  %142 = vmatpush.bf16.msra.mxu0 %v100
  %143 = vmatpush.bf16.msra.mxu0 %v98
  %144 = vmatpush.bf16.msra.mxu0 %v96
  %145 = vmatmul.bf16.gmra.mxu0 %v128
  %v146 = vpop.f32.mrf.mxu0
  %v147 = vadd.f32 %v47, %v146
  %v148 = vpop.f32.mrf.mxu0
  %149 = vdwg.mxu0
  %150 = vmatpush.bf16.msra.mxu0 %v135
  %151 = vmatpush.bf16.msra.mxu0 %v109
  %152 = vmatpush.bf16.msra.mxu0 %v107
  %153 = vmatpush.bf16.msra.mxu0 %v105
  %154 = vmatpush.bf16.msra.mxu0 %v103
  %155 = vmatpush.bf16.msra.mxu0 %v101
  %156 = vmatpush.bf16.msra.mxu0 %v99
  %157 = vmatpush.bf16.msra.mxu0 %v97
  %158 = vmatmul.bf16.gmra.mxu0 %v128
  %v159 = vpop.f32.mrf.mxu0
  %v160 = vadd.f32 %v48, %v159
  %v161 = vpop.f32.mrf.mxu0
  %162 = vdwg.mxu0
  %v163 = vmax.f32 %v147, 0.0
  %v164 = vmax.f32 %v160, 0.0
  %v165 = vpack.c.bf16 %v163, %v163
  %v166 = vpack.c.bf16 %v164, %v164
  %v167 = vld [vmem:[%s3] sm:$0xf]
  %v168 = vld [vmem:[%s3 + $0x4] sm:$0xf]
  %v169 = vld [vmem:[%s3 + $0x8] sm:$0xf]
  %v170 = vld [vmem:[%s3 + $0xc] sm:$0xf]
  %v171 = vld [vmem:[%s3 + $0x10] sm:$0xf]
  %v172 = vld [vmem:[%s3 + $0x14] sm:$0xf]
  %v173 = vld [vmem:[%s3 + $0x18] sm:$0xf]
  %v174 = vld [vmem:[%s3 + $0x1c] sm:$0xf]
  %v175 = vld [vmem:[%s3 + $0x20] sm:$0xf]
  %v176 = vld [vmem:[%s3 + $0x24] sm:$0xf]
  %v177 = vld [vmem:[%s3 + $0x28] sm:$0xf]
  %v178 = vld [vmem:[%s3 + $0x2c] sm:$0xf]
  %v179 = vld [vmem:[%s3 + $0x30] sm:$0xf]
  %v180 = vld [vmem:[%s3 + $0x34] sm:$0xf]
  %v181 = vld [vmem:[%s3 + $0x38] sm:$0xf]
  %v182 = vld [vmem:[%s3 + $0x3c] sm:$0xf]
  %v183 = vld [vmem:[%s3 + $0x40] sm:$0xf]
  %v184 = vld [vmem:[%s3 + $0x44] sm:$0xf]
  %v185 = vld [vmem:[%s3 + $0x48] sm:$0xf]
  %v186 = vld [vmem:[%s3 + $0x4c] sm:$0xf]
  %v187 = vld [vmem:[%s3 + $0x50] sm:$0xf]
  %v188 = vld [vmem:[%s3 + $0x54] sm:$0xf]
  %v189 = vld [vmem:[%s3 + $0x58] sm:$0xf]
  %v190 = vld [vmem:[%s3 + $0x5c] sm:$0xf]
  %v191 = vld [vmem:[%s3 + $0x60] sm:$0xf]
  %v192 = vld [vmem:[%s3 + $0x64] sm:$0xf]
  %v193 = vld [vmem:[%s3 + $0x68] sm:$0xf]
  %v194 = vld [vmem:[%s3 + $0x6c] sm:$0xf]
  %v195 = vld [vmem:[%s3 + $0x70] sm:$0xf]
  %v196 = vld [vmem:[%s3 + $0x74] sm:$0xf]
  %v197 = vld [vmem:[%s3 + $0x78] sm:$0xf]
  %v198 = vld [vmem:[%s3 + $0x7c] sm:$0xf]
  %v200 = vperm.slane %v27, 0
  %v234 = vunpack.c.l.b16 %v167
  %v235 = vunpack.c.l.b16 %v168
  %v236 = vunpack.c.l.b16 %v169
  %v237 = vunpack.c.l.b16 %v170
  %v238 = vunpack.c.l.b16 %v171
  %v239 = vunpack.c.l.b16 %v172
  %v240 = vunpack.c.l.b16 %v173
  %v241 = vunpack.c.l.b16 %v174
  %v242 = vunpack.c.l.b16 %v175
  %v243 = vunpack.c.l.b16 %v176
  %v244 = vunpack.c.l.b16 %v177
  %v245 = vunpack.c.l.b16 %v178
  %v246 = vunpack.c.l.b16 %v179
  %v247 = vunpack.c.l.b16 %v180
  %v248 = vunpack.c.l.b16 %v181
  %v249 = vunpack.c.l.b16 %v182
  %v250 = vunpack.c.l.b16 %v183
  %v251 = vunpack.c.l.b16 %v184
  %v252 = vunpack.c.l.b16 %v185
  %v253 = vunpack.c.l.b16 %v186
  %v254 = vunpack.c.l.b16 %v187
  %v255 = vunpack.c.l.b16 %v188
  %v256 = vunpack.c.l.b16 %v189
  %v257 = vunpack.c.l.b16 %v190
  %v258 = vunpack.c.l.b16 %v191
  %v259 = vunpack.c.l.b16 %v192
  %v260 = vunpack.c.l.b16 %v193
  %v261 = vunpack.c.l.b16 %v194
  %v262 = vunpack.c.l.b16 %v195
  %v263 = vunpack.c.l.b16 %v196
  %v264 = vunpack.c.l.b16 %v197
  %v265 = vunpack.c.l.b16 %v198
  %v266 = vpack.c.b16 %v235, %v234
  %v267 = vpack.c.b16 %v237, %v236
  %v268 = vpack.c.b16 %v239, %v238
  %v269 = vpack.c.b16 %v241, %v240
  %v270 = vpack.c.b16 %v243, %v242
  %v271 = vpack.c.b16 %v245, %v244
  %v272 = vpack.c.b16 %v247, %v246
  %v273 = vpack.c.b16 %v249, %v248
  %v274 = vpack.c.b16 %v251, %v250
  %v275 = vpack.c.b16 %v253, %v252
  %v276 = vpack.c.b16 %v255, %v254
  %v277 = vpack.c.b16 %v257, %v256
  %v278 = vpack.c.b16 %v259, %v258
  %v279 = vpack.c.b16 %v261, %v260
  %v280 = vpack.c.b16 %v263, %v262
  %v281 = vpack.c.b16 %v265, %v264
  %298 = vmatpush.bf16.msra.mxu0 %v273
  %299 = vmatpush.bf16.msra.mxu0 %v272
  %300 = vmatpush.bf16.msra.mxu0 %v271
  %301 = vmatpush.bf16.msra.mxu0 %v270
  %302 = vmatpush.bf16.msra.mxu0 %v269
  %303 = vmatpush.bf16.msra.mxu0 %v268
  %304 = vmatpush.bf16.msra.mxu0 %v267
  %305 = vmatpush.bf16.msra.mxu0 %v266
  %306 = vmatmul.bf16.gmra.mxu0 %v165
  %v307 = vpop.f32.mrf.mxu0
  %v308 = vadd.f32 %v200, %v307
  %v309 = vpop.f32.mrf.mxu0
  %310 = vdwg.mxu0
  %311 = vmatpush.bf16.msra.mxu0 %v281
  %312 = vmatpush.bf16.msra.mxu0 %v280
  %313 = vmatpush.bf16.msra.mxu0 %v279
  %314 = vmatpush.bf16.msra.mxu0 %v278
  %315 = vmatpush.bf16.msra.mxu0 %v277
  %316 = vmatpush.bf16.msra.mxu0 %v276
  %317 = vmatpush.bf16.msra.mxu0 %v275
  %318 = vmatpush.bf16.msra.mxu0 %v274
  %319 = vmatmul.bf16.gmra.mxu0 %v166
  %v320 = vpop.f32.mrf.mxu0
  %v321 = vadd.f32 %v308, %v320
  %v322 = vpop.f32.mrf.mxu0
  %323 = vdwg.mxu0
  %v324 = vmax.f32 %v321, 0.0
  %v325 = vpack.c.bf16 %v324, %v324
  %v326 = vld [vmem:[%s5] sm:$0xf]
  %v327 = vld [vmem:[%s5 + $0x4] sm:$0xf]
  %v328 = vld [vmem:[%s5 + $0x8] sm:$0xf]
  %v329 = vld [vmem:[%s5 + $0xc] sm:$0xf]
  %v330 = vld [vmem:[%s5 + $0x10] sm:$0xf]
  %v331 = vld [vmem:[%s5 + $0x14] sm:$0xf]
  %v332 = vld [vmem:[%s5 + $0x18] sm:$0xf]
  %v333 = vld [vmem:[%s5 + $0x1c] sm:$0xf]
  %v334 = vld [vmem:[%s5 + $0x20] sm:$0xf]
  %v335 = vld [vmem:[%s5 + $0x24] sm:$0xf]
  %v336 = vld [vmem:[%s5 + $0x28] sm:$0xf]
  %v337 = vld [vmem:[%s5 + $0x2c] sm:$0xf]
  %v338 = vld [vmem:[%s5 + $0x30] sm:$0xf]
  %v339 = vld [vmem:[%s5 + $0x34] sm:$0xf]
  %v340 = vld [vmem:[%s5 + $0x38] sm:$0xf]
  %v341 = vld [vmem:[%s5 + $0x3c] sm:$0xf]
  %v343 = vperm.slane %v28, 0
  %v361 = vunpack.c.l.b16 %v326
  %v362 = vunpack.c.l.b16 %v327
  %v363 = vunpack.c.l.b16 %v328
  %v364 = vunpack.c.l.b16 %v329
  %v365 = vunpack.c.l.b16 %v330
  %v366 = vunpack.c.l.b16 %v331
  %v367 = vunpack.c.l.b16 %v332
  %v368 = vunpack.c.l.b16 %v333
  %v369 = vunpack.c.l.b16 %v334
  %v370 = vunpack.c.l.b16 %v335
  %v371 = vunpack.c.l.b16 %v336
  %v372 = vunpack.c.l.b16 %v337
  %v373 = vunpack.c.l.b16 %v338
  %v374 = vunpack.c.l.b16 %v339
  %v375 = vunpack.c.l.b16 %v340
  %v376 = vunpack.c.l.b16 %v341
  %v377 = vpack.c.b16 %v362, %v361
  %v378 = vpack.c.b16 %v364, %v363
  %v379 = vpack.c.b16 %v366, %v365
  %v380 = vpack.c.b16 %v368, %v367
  %v381 = vpack.c.b16 %v370, %v369
  %v382 = vpack.c.b16 %v372, %v371
  %v383 = vpack.c.b16 %v374, %v373
  %v384 = vpack.c.b16 %v376, %v375
  %393 = vmatpush.bf16.msra.mxu0 %v384
  %394 = vmatpush.bf16.msra.mxu0 %v383
  %395 = vmatpush.bf16.msra.mxu0 %v382
  %396 = vmatpush.bf16.msra.mxu0 %v381
  %397 = vmatpush.bf16.msra.mxu0 %v380
  %398 = vmatpush.bf16.msra.mxu0 %v379
  %399 = vmatpush.bf16.msra.mxu0 %v378
  %400 = vmatpush.bf16.msra.mxu0 %v377
  %401 = vmatmul.bf16.gmra.mxu0 %v325
  %v402 = vpop.f32.mrf.mxu0
  %v403 = vadd.f32 %v343, %v402
  %v404 = vpop.f32.mrf.mxu0
  %405 = vdwg.mxu0
  %vm406 = vcmask 97280
  %407 = vst.msk [vmem:[%s7] sm:$0xff] %vm406, %v403
  // Predicated region
  $region30: #{enhanced_nn_forward.1} parent=0 // pred_check
    _
  $region31: #{enhanced_nn_forward.1} parent=0 // pred_check_branch
    %409 = sbr.rel (0) target = $region33
  $region32: #{enhanced_nn_forward.1} parent=0 // pred_region
    _
  $region33: #{enhanced_nn_forward.1} parent=0 // pred_fallthru
    _
  // Predicated region
  $region34: #{enhanced_nn_forward.1} parent=0 // pred_check
    _
  $region35: #{enhanced_nn_forward.1} parent=0 // pred_check_branch
    %411 = sbr.rel (0) target = $region37
  $region36: #{enhanced_nn_forward.1} parent=0 // pred_region
    _
  $region37: #{enhanced_nn_forward.1} parent=0 // pred_fallthru
    _

</llo_original>
